<compile_context>
chip_gen: v6e
topology: v6e:2x2x1
jax: 0.10.0
libtpu: 0.0.40
codegen_flags: <defaults>
</compile_context>

<pallas_src>
import functools

import jax
import jax.numpy as jnp
import numpy as np
from jax.experimental import pallas as pl
from jax.experimental.pallas import tpu as pltpu


def _discarded_kernel(x_ref, w_ref, b_ref, out_ref, *,
                      n_rows, n_valid, num_patterns, dilations):
    """One batch tile of boards.

    x_ref  : [tb * n_rows, C]   bf16   (n_rows = time steps per board, padded to x8)
    w_ref  : [C, 2 * nb * P]    bf16   fused conv taps, branch-major, [a|b] per branch
    b_ref  : [1, 2 * nb * P]    f32    fused biases (bias in a-lanes, 0 in b-lanes)
    out_ref: [tb, 2P]           f32    lanes [0, P) hold the result
    """
    tb = x_ref.shape[0] // n_rows
    p = num_patterns
    p2 = 2 * p                       # [tap-a | tap-b] lanes per branch (128 for P=64)
    nb = len(dilations)

    # Single fused MXU matmul for all 2*nb conv taps (bf16 operands, f32 accumulate).
    y = jnp.dot(x_ref[...], w_ref[...], preferred_element_type=jnp.float32)
    # Tile-aligned split of the row axis back into (board, time); lanes unchanged.
    y = y.reshape(tb, n_rows, nb * p2)
    bias = b_ref[...]                # [1, nb * p2] f32

    acc = jnp.zeros((tb, p2), jnp.float32)
    for j, d in enumerate(dilations):
        yd = y[:, :, j * p2:(j + 1) * p2]          # [tb, n_rows, 2P]; 128-lane aligned (P=64)
        # Move the tap-b half onto the tap-a lanes (XLU lane rotation by P; since
        # P == p2 / 2 the rotation direction is irrelevant).
        yd_sw = pltpu.roll(yd, shift=p, axis=2)
        L = n_valid - d                            # temporal output length of this branch
        # Conv1d(k=2, dilation=d): s[t] = a[t] + b[t + d] + bias   (valid on lanes [0, P))
        s = yd[:, :L, :] + yd_sw[:, d:d + L, :] + bias[:, j * p2:(j + 1) * p2]
        s = jnp.maximum(s, 0.0)                    # ReLU (f32, VPU)
        acc = acc + jnp.sum(s, axis=1) * (1.0 / L)  # mean over time as sum * (1/L)

    out_ref[...] = acc   # lanes [0, P) are the module output; upper lanes dropped by caller.


@functools.partial(jax.jit,
                   static_argnames=("num_patterns", "block_boards", "compute_dtype"))
def discarded_module(discarded_idx, card_features, params, *, num_patterns=64,
                     block_boards=128, compute_dtype=jnp.bfloat16):
    """discarded_idx: int [B, N]; card_features: f32 [num_cards, C];
    params[d] = (W [P, C, 2], b [P]) for d in (1, 2, 4)."""
    B, N = discarded_idx.shape
    C = card_features.shape[-1]
    P = num_patterns
    dilations = (1, 2, 4)
    if N <= max(dilations):
        raise ValueError(
            f"N={N} too small: Conv1d(kernel_size=2, dilation=4) needs N > 4.")

    # --- Fuse all six conv taps into one [C, 6P] matrix (branch-major, [a|b] per branch).
    w_cols, b_cols = [], []
    for d in dilations:
        W, b = params[d]                                        # W: [P, C, 2], b: [P]
        w_cols += [jnp.transpose(W[:, :, 0]), jnp.transpose(W[:, :, 1])]   # [C, P] each
        b_cols += [b.reshape(1, P), jnp.zeros((1, P), jnp.float32)]
    w_all = jnp.concatenate(w_cols, axis=1).astype(compute_dtype)   # [C, 2*nb*P]
    b_all = jnp.concatenate(b_cols, axis=1).astype(jnp.float32)     # [1, 2*nb*P]

    # --- Batch tiling: tb boards per grid step. tb is a multiple of 8 so every block
    #     is sublane-aligned. Default 128 boards/step keeps live VMEM at a few MiB —
    #     well under v7x's 64 MiB (32 MiB scoped default); raise vmem_limit_bytes in
    #     CompilerParams only if block_boards is cranked way up.
    tb = max(1, min(block_boards, B))
    tb = ((tb + 7) // 8) * 8
    Bp = pl.cdiv(B, tb) * tb                 # pad batch to a multiple of the tile
    Np = ((N + 7) // 8) * 8                  # pad time so the in-kernel row split is tile-aligned

    idx = discarded_idx.astype(jnp.int32)
    if Bp != B or Np != N:
        idx = jnp.pad(idx, ((0, Bp - B), (0, Np - N)))   # card 0 as harmless filler

    # TODO(synk): the int -> card_features embedding lookup stays in plain JAX/XLA
    # (gather); a data-dependent DMA gather inside the kernel is possible but not
    # worthwhile at C=6. Flattening here means the kernel needs no input reshape.
    x_flat = card_features.astype(compute_dtype)[idx.reshape(-1)]   # [Bp*Np, C] bf16

    kernel = functools.partial(_discarded_kernel, n_rows=Np, n_valid=N,
                               num_patterns=P, dilations=dilations)
    wide = 2 * len(dilations) * P            # fused weight / bias lane width (384)

    out_full = pl.pallas_call(
        kernel,
        out_shape=jax.ShapeDtypeStruct((Bp, 2 * P), jnp.float32),
        grid=(Bp // tb,),
        in_specs=[
            pl.BlockSpec((tb * Np, C), lambda i: (i, 0)),   # boards for this tile
            pl.BlockSpec((C, wide), lambda i: (0, 0)),      # fused taps (resident)
            pl.BlockSpec((1, wide), lambda i: (0, 0)),      # fused biases (resident)
        ],
        out_specs=pl.BlockSpec((tb, 2 * P), lambda i: (i, 0)),   # lane-dense stores
        compiler_params=pltpu.CompilerParams(
            dimension_semantics=("parallel",)),              # lets v7x use both TCs
    )(x_flat, w_all, b_all)

    return out_full[:B, :P]


def _reference(discarded_idx, card_features, params, num_patterns=64):
    # Pure-JAX (f32) replica of the PyTorch forward (NCW conv) for validation.
    x = card_features[discarded_idx]              # [B, N, 6]
    x = jnp.transpose(x, (0, 2, 1))               # [B, 6, N]
    N = x.shape[-1]
    out = jnp.zeros((x.shape[0], num_patterns), jnp.float32)
    for d in (1, 2, 4):
        W, b = params[d]
        L = N - d
        y = (jnp.einsum("oc,bcl->bol", W[:, :, 0], x[:, :, :L])
             + jnp.einsum("oc,bcl->bol", W[:, :, 1], x[:, :, d:d + L])
             + b[None, :, None])
        out = out + jnp.maximum(y, 0.0).mean(axis=-1)
    return out


if __name__ == "__main__":
    num_cards, C, P = 40, 6, 64   # briscola deck size, card feature dim, num_patterns

    key = jax.random.PRNGKey(0)
    k_cf, k_idx, k_idx2, k_w1, k_b1, k_w2, k_b2, k_w4, k_b4 = jax.random.split(key, 9)

    card_features = jax.random.normal(k_cf, (num_cards, C), jnp.float32)

    def conv_params(kw, kb):
        w = jax.random.normal(kw, (P, C, 2), jnp.float32) * 0.3
        b = jax.random.normal(kb, (P,), jnp.float32) * 0.1
        return (w, b)

    params = {1: conv_params(k_w1, k_b1),
              2: conv_params(k_w2, k_b2),
              4: conv_params(k_w4, k_b4)}

    # --- Test 1: small module-scale shape (B=2 boards, N=8 discarded cards).
    B, N = 2, 8
    idx = jax.random.randint(k_idx, (B, N), 0, num_cards, jnp.int32)
    out = discarded_module(idx, card_features, params, num_patterns=P)
    out = jax.block_until_ready(out)
    ref = _reference(idx, card_features, params, num_patterns=P)
    np.testing.assert_allclose(np.asarray(out), np.asarray(ref), rtol=3e-2, atol=3e-2)

    # --- Test 2: exercises the batch grid (>1 step), batch padding and time padding.
    B2, N2 = 19, 10
    idx2 = jax.random.randint(k_idx2, (B2, N2), 0, num_cards, jnp.int32)
    out2 = discarded_module(idx2, card_features, params, num_patterns=P, block_boards=8)
    out2 = jax.block_until_ready(out2)
    ref2 = _reference(idx2, card_features, params, num_patterns=P)
    np.testing.assert_allclose(np.asarray(out2), np.asarray(ref2), rtol=3e-2, atol=3e-2)

    print("KERNEL_OK")
</pallas_src>

<mosaic_0001>
module attributes {stable_mosaic.version = 11 : i64} {
  func.func @_discarded_kernel(%arg0: i32, %arg1: memref<64x6xbf16, #tpu.memory_space<vmem>>, %arg2: memref<6x384xbf16, #tpu.memory_space<vmem>>, %arg3: memref<1x384xf32, #tpu.memory_space<vmem>>, %arg4: memref<8x128xf32, #tpu.memory_space<vmem>>) attributes {dimension_semantics = [#tpu.dimension_semantics<parallel>], iteration_bounds = array<i64: 1>, scalar_prefetch = 0 : i64, scratch_operands = 0 : i64, tpu.core_type = #tpu.core_type<tc>, window_params = [{transform_indices = @transform_0, window_bounds = array<i64: 64, 6>}, {pipeline_mode = #tpu.pipeline_mode<synchronous>, transform_indices = @transform_1, window_bounds = array<i64: 6, 384>}, {pipeline_mode = #tpu.pipeline_mode<synchronous>, transform_indices = @transform_2, window_bounds = array<i64: 1, 384>}, {transform_indices = @transform_3, window_bounds = array<i64: 8, 128>}]} {
    %c0 = arith.constant 0 : index
    %c0_0 = arith.constant 0 : index
    %0 = vector.load %arg1[%c0, %c0_0] : memref<64x6xbf16, #tpu.memory_space<vmem>>, vector<64x6xbf16>
    %c0_1 = arith.constant 0 : index
    %c0_2 = arith.constant 0 : index
    %1 = vector.load %arg2[%c0_1, %c0_2] : memref<6x384xbf16, #tpu.memory_space<vmem>>, vector<6x384xbf16>
    %cst = arith.constant dense<0.000000e+00> : vector<64x384xf32>
    %2 = tpu.matmul %0, %1, %cst {dimension_numbers = #tpu.dot_dimension_numbers<[1], [0], [0], [1], [0, 0, 1, 1], [], []>} : vector<64x6xbf16>, vector<6x384xbf16>, vector<64x384xf32> -> vector<64x384xf32>
    %3 = vector.shape_cast %2 : vector<64x384xf32> to vector<8x8x384xf32>
    %c0_3 = arith.constant 0 : index
    %c0_4 = arith.constant 0 : index
    %4 = vector.load %arg3[%c0_3, %c0_4] : memref<1x384xf32, #tpu.memory_space<vmem>>, vector<1x384xf32>
    %cst_5 = arith.constant 0.000000e+00 : f32
    %5 = vector.broadcast %cst_5 : f32 to vector<8x128xf32>
    %6 = vector.extract_strided_slice %3 {offsets = [0, 0, 0], sizes = [8, 8, 128], strides = [1, 1, 1]} : vector<8x8x384xf32> to vector<8x8x128xf32>
    %c64_i32 = arith.constant 64 : i32
    %7 = tpu.dynamic_rotate %6 by %c64_i32 dim 2 : vector<8x8x128xf32>, i32 -> vector<8x8x128xf32>
    %8 = vector.extract_strided_slice %6 {offsets = [0, 0, 0], sizes = [8, 7, 128], strides = [1, 1, 1]} : vector<8x8x128xf32> to vector<8x7x128xf32>
    %9 = vector.extract_strided_slice %7 {offsets = [0, 1, 0], sizes = [8, 7, 128], strides = [1, 1, 1]} : vector<8x8x128xf32> to vector<8x7x128xf32>
    %10 = arith.addf %8, %9 : vector<8x7x128xf32>
    %11 = vector.extract_strided_slice %4 {offsets = [0, 0], sizes = [1, 128], strides = [1, 1]} : vector<1x384xf32> to vector<1x128xf32>
    %12 = vector.shape_cast %11 : vector<1x128xf32> to vector<1x1x128xf32>
    %13 = vector.broadcast %12 : vector<1x1x128xf32> to vector<8x7x128xf32>
    %14 = arith.addf %10, %13 : vector<8x7x128xf32>
    %cst_6 = arith.constant 0.000000e+00 : f32
    %15 = vector.broadcast %cst_6 : f32 to vector<8x7x128xf32>
    %16 = arith.maximumf %14, %15 : vector<8x7x128xf32>
    %cst_7 = arith.constant dense<0.000000e+00> : vector<8x128xf32>
    %17 = vector.multi_reduction <add>, %16, %cst_7 [1] : vector<8x7x128xf32> to vector<8x128xf32>
    %cst_8 = arith.constant 0.142857149 : f32
    %18 = vector.broadcast %cst_8 : f32 to vector<8x128xf32>
    %19 = arith.mulf %17, %18 : vector<8x128xf32>
    %20 = arith.addf %5, %19 : vector<8x128xf32>
    %21 = vector.extract_strided_slice %3 {offsets = [0, 0, 128], sizes = [8, 8, 128], strides = [1, 1, 1]} : vector<8x8x384xf32> to vector<8x8x128xf32>
    %c64_i32_9 = arith.constant 64 : i32
    %22 = tpu.dynamic_rotate %21 by %c64_i32_9 dim 2 : vector<8x8x128xf32>, i32 -> vector<8x8x128xf32>
    %23 = vector.extract_strided_slice %21 {offsets = [0, 0, 0], sizes = [8, 6, 128], strides = [1, 1, 1]} : vector<8x8x128xf32> to vector<8x6x128xf32>
    %24 = vector.extract_strided_slice %22 {offsets = [0, 2, 0], sizes = [8, 6, 128], strides = [1, 1, 1]} : vector<8x8x128xf32> to vector<8x6x128xf32>
    %25 = arith.addf %23, %24 : vector<8x6x128xf32>
    %26 = vector.extract_strided_slice %4 {offsets = [0, 128], sizes = [1, 128], strides = [1, 1]} : vector<1x384xf32> to vector<1x128xf32>
    %27 = vector.shape_cast %26 : vector<1x128xf32> to vector<1x1x128xf32>
    %28 = vector.broadcast %27 : vector<1x1x128xf32> to vector<8x6x128xf32>
    %29 = arith.addf %25, %28 : vector<8x6x128xf32>
    %cst_10 = arith.constant 0.000000e+00 : f32
    %30 = vector.broadcast %cst_10 : f32 to vector<8x6x128xf32>
    %31 = arith.maximumf %29, %30 : vector<8x6x128xf32>
    %cst_11 = arith.constant dense<0.000000e+00> : vector<8x128xf32>
    %32 = vector.multi_reduction <add>, %31, %cst_11 [1] : vector<8x6x128xf32> to vector<8x128xf32>
    %cst_12 = arith.constant 0.166666672 : f32
    %33 = vector.broadcast %cst_12 : f32 to vector<8x128xf32>
    %34 = arith.mulf %32, %33 : vector<8x128xf32>
    %35 = arith.addf %20, %34 : vector<8x128xf32>
    %36 = vector.extract_strided_slice %3 {offsets = [0, 0, 256], sizes = [8, 8, 128], strides = [1, 1, 1]} : vector<8x8x384xf32> to vector<8x8x128xf32>
    %c64_i32_13 = arith.constant 64 : i32
    %37 = tpu.dynamic_rotate %36 by %c64_i32_13 dim 2 : vector<8x8x128xf32>, i32 -> vector<8x8x128xf32>
    %38 = vector.extract_strided_slice %36 {offsets = [0, 0, 0], sizes = [8, 4, 128], strides = [1, 1, 1]} : vector<8x8x128xf32> to vector<8x4x128xf32>
    %39 = vector.extract_strided_slice %37 {offsets = [0, 4, 0], sizes = [8, 4, 128], strides = [1, 1, 1]} : vector<8x8x128xf32> to vector<8x4x128xf32>
    %40 = arith.addf %38, %39 : vector<8x4x128xf32>
    %41 = vector.extract_strided_slice %4 {offsets = [0, 256], sizes = [1, 128], strides = [1, 1]} : vector<1x384xf32> to vector<1x128xf32>
    %42 = vector.shape_cast %41 : vector<1x128xf32> to vector<1x1x128xf32>
    %43 = vector.broadcast %42 : vector<1x1x128xf32> to vector<8x4x128xf32>
    %44 = arith.addf %40, %43 : vector<8x4x128xf32>
    %cst_14 = arith.constant 0.000000e+00 : f32
    %45 = vector.broadcast %cst_14 : f32 to vector<8x4x128xf32>
    %46 = arith.maximumf %44, %45 : vector<8x4x128xf32>
    %cst_15 = arith.constant dense<0.000000e+00> : vector<8x128xf32>
    %47 = vector.multi_reduction <add>, %46, %cst_15 [1] : vector<8x4x128xf32> to vector<8x128xf32>
    %cst_16 = arith.constant 2.500000e-01 : f32
    %48 = vector.broadcast %cst_16 : f32 to vector<8x128xf32>
    %49 = arith.mulf %47, %48 : vector<8x128xf32>
    %50 = arith.addf %35, %49 : vector<8x128xf32>
    %c0_17 = arith.constant 0 : index
    %c0_18 = arith.constant 0 : index
    %51 = vector.load %arg4[%c0_17, %c0_18] : memref<8x128xf32, #tpu.memory_space<vmem>>, vector<8x128xf32>
    tpu.vector_store %arg4[%c0_17, %c0_18], %50 {strides = array<i32>} : memref<8x128xf32, #tpu.memory_space<vmem>>, vector<8x128xf32>,
    return
  }
  func.func @transform_0(%arg0: i32) -> (i32, i32) {
    %c0_i32 = arith.constant 0 : i32
    %c0_i32_0 = arith.constant 0 : i32
    return %arg0, %c0_i32 : i32, i32
  }
  func.func @transform_1(%arg0: i32) -> (i32, i32) {
    %c0_i32 = arith.constant 0 : i32
    %c0_i32_0 = arith.constant 0 : i32
    %c0_i32_1 = arith.constant 0 : i32
    return %c0_i32, %c0_i32_0 : i32, i32
  }
  func.func @transform_2(%arg0: i32) -> (i32, i32) {
    %c0_i32 = arith.constant 0 : i32
    %c0_i32_0 = arith.constant 0 : i32
    %c0_i32_1 = arith.constant 0 : i32
    return %c0_i32, %c0_i32_0 : i32, i32
  }
  func.func @transform_3(%arg0: i32) -> (i32, i32) {
    %c0_i32 = arith.constant 0 : i32
    %c0_i32_0 = arith.constant 0 : i32
    return %arg0, %c0_i32 : i32, i32
  }
}

</mosaic_0001>

<llo_original>
// kernel: discarded_module.1
$region0: #{discarded_module.1}
  #allocation0 [shape = 'u32[]', space=smem, size = 0x4, offset = 0x4, fixed_abs, tag = 'smem constant byte address 0x4 - core index']
  #allocation1 [shape = 'u32[144,128]{1,0:T(1,128)}', space=vmem, size = 0x12000, scoped, tag = 'internal scratch']
  %s0 = inlined_call_operand.vmem [shape: bf16[64,6], index: 0, kind: input, shape index: {}]
  %s1 = inlined_call_operand.vmem [shape: bf16[6,384], index: 1, kind: input, shape index: {}]
  %s2 = inlined_call_operand.vmem [shape: f32[1,384], index: 2, kind: input, shape index: {}]
  %s3 = inlined_call_operand.vmem [shape: f32[8,128], index: 3, kind: output, shape index: {}]
  %s4 = sld [smem:[#allocation0]]
  $region22: #{discarded_module.1} parent=0
    _
  %s6 = ssub.s32 1, %s4
  %s7 = scalar_select 0, %s6, %s4
  // Predicated region
  $region2: #{discarded_module.1} parent=0 // pred_check
    _
  $region3: #{discarded_module.1} parent=0 // pred_check_branch
    %9 = sbr.rel (0) target = $region5
  $region4: #{discarded_module.1} parent=0 // pred_region
    _
  $region5: #{discarded_module.1} parent=0 // pred_fallthru
    _
  // Predicated region
  $region6: #{discarded_module.1} parent=0 // pred_check
    _
  $region7: #{discarded_module.1} parent=0 // pred_check_branch
    %11 = sbr.rel (0) target = $region9
  $region8: #{discarded_module.1} parent=0 // pred_region
    _
  $region9: #{discarded_module.1} parent=0 // pred_fallthru
    _
  // Predicated region
  $region10: #{discarded_module.1} parent=0 // pred_check
    _
  $region11: #{discarded_module.1} parent=0 // pred_check_branch
    %13 = sbr.rel (0) target = $region13
  $region12: #{discarded_module.1} parent=0 // pred_region
    _
  $region13: #{discarded_module.1} parent=0 // pred_fallthru
    _
  %v15 = vld [vmem:[%s0] sm:$0xf]
  %v16 = vld [vmem:[%s0 + $0x4] sm:$0xf]
  %v17 = vld [vmem:[%s0 + $0x8] sm:$0xf]
  %v18 = vld [vmem:[%s0 + $0xc] sm:$0xf]
  %v19 = vld [vmem:[%s0 + $0x10] sm:$0xf]
  %v20 = vld [vmem:[%s0 + $0x14] sm:$0xf]
  %v21 = vld [vmem:[%s0 + $0x18] sm:$0xf]
  %v22 = vld [vmem:[%s0 + $0x1c] sm:$0xf]
  %v23 = vld [vmem:[%s1] sm:$0x77]
  %v24 = vld [vmem:[%s1 + $0x8] sm:$0x7]
  %v33 = vunpack.c.l.b16 %v15
  %v34 = vunpack.c.l.b16 %v16
  %v35 = vunpack.c.l.b16 %v17
  %v36 = vunpack.c.l.b16 %v18
  %v37 = vunpack.c.l.b16 %v19
  %v38 = vunpack.c.l.b16 %v20
  %v39 = vunpack.c.l.b16 %v21
  %v40 = vunpack.c.l.b16 %v22
  %v41 = vpack.c.b16 %v34, %v33
  %v42 = vpack.c.b16 %v36, %v35
  %v43 = vpack.c.b16 %v38, %v37
  %v44 = vpack.c.b16 %v40, %v39
  %v47 = vunpack.c.l.b16 %v23
  %v48 = vunpack.c.h.b16 %v23
  %v49 = vunpack.c.l.b16 %v24
  %v50 = vpack.c.b16 %v47, %v47
  %v51 = vpack.c.b16 %v48, %v48
  %v52 = vpack.c.b16 %v49, %v49
  %vm53 = vcmask 48128
  %v55 = vsel %vm53, %v41, 0
  %v58 = vsel %vm53, %v42, 0
  %v61 = vsel %vm53, %v43, 0
  %v64 = vsel %vm53, %v44, 0
  %vm66 = vcmask 1042432
  %v68 = vsel %vm66, %v50, 0
  %v71 = vsel %vm66, %v51, 0
  %v74 = vsel %vm66, %v52, 0
  %76 = vmatprep.subr.bf16.mxu0 0
  %77 = vmatpush1.bf16.msra.mxu0 0
  %78 = vmatprep.subr.bf16.mxu0 0
  %79 = vmatpush1.bf16.msra.mxu0 0
  %80 = vmatprep.subr.bf16.mxu0 0
  %81 = vmatpush1.bf16.msra.mxu0 0
  %82 = vmatprep.subr.bf16.mxu0 0
  %83 = vmatpush1.bf16.msra.mxu0 0
  %84 = vmatprep.subr.bf16.mxu0 0
  %85 = vmatpush1.bf16.msra.mxu0 0
  %86 = vmatprep.subr.bf16.mxu0 0
  %87 = vmatpush1.bf16.msra.mxu0 0
  %88 = vmatprep.subr.bf16.mxu0 0
  %89 = vmatpush1.bf16.msra.mxu0 0
  %90 = vmatprep.subr.bf16.mxu0 %v71
  %91 = vmatpush1.bf16.msra.mxu0 %v68
  %92 = vmatprep.subr.bf16.mxu0 0
  %93 = vmatpush2.bf16.msra.mxu0 0
  %94 = vmatprep.subr.bf16.mxu0 0
  %95 = vmatpush2.bf16.msra.mxu0 0
  %96 = vmatprep.subr.bf16.mxu0 0
  %97 = vmatpush2.bf16.msra.mxu0 0
  %98 = vmatprep.subr.bf16.mxu0 0
  %99 = vmatpush2.bf16.msra.mxu0 0
  %100 = vmatprep.subr.bf16.mxu0 0
  %101 = vmatpush2.bf16.msra.mxu0 0
  %102 = vmatprep.subr.bf16.mxu0 0
  %103 = vmatpush2.bf16.msra.mxu0 0
  %104 = vmatprep.subr.bf16.mxu0 0
  %105 = vmatpush2.bf16.msra.mxu0 0
  %106 = vmatprep.subr.bf16.mxu0 0
  %107 = vmatpush2.bf16.msra.mxu0 0
  %108 = vmatprep.mubr.bf16.mxu0 0
  %109 = vmatmul.mubr.bf16.gmra.mxu0 %v55
  %v110 = vpop.f32.mrf.mxu0
  %v111 = vadd.f32 0.0, %v110
  %v112 = vpop.f32.mrf.mxu0
  %v113 = vadd.f32 0.0, %v112
  %v114 = vpop.f32.mrf.mxu0
  %v115 = vadd.f32 0.0, %v114
  %v116 = vpop.f32.mrf.mxu0
  %v117 = vadd.f32 0.0, %v116
  %118 = vmatprep.mubr.bf16.mxu0 0
  %119 = vmatmul.mubr.bf16.gmra.mxu0 %v58
  %v120 = vpop.f32.mrf.mxu0
  %v121 = vadd.f32 0.0, %v120
  %v122 = vpop.f32.mrf.mxu0
  %v123 = vadd.f32 0.0, %v122
  %v124 = vpop.f32.mrf.mxu0
  %v125 = vadd.f32 0.0, %v124
  %v126 = vpop.f32.mrf.mxu0
  %v127 = vadd.f32 0.0, %v126
  %128 = vmatprep.mubr.bf16.mxu0 0
  %129 = vmatmul.mubr.bf16.gmra.mxu0 %v61
  %v130 = vpop.f32.mrf.mxu0
  %v131 = vadd.f32 0.0, %v130
  %v132 = vpop.f32.mrf.mxu0
  %v133 = vadd.f32 0.0, %v132
  %v134 = vpop.f32.mrf.mxu0
  %v135 = vadd.f32 0.0, %v134
  %v136 = vpop.f32.mrf.mxu0
  %v137 = vadd.f32 0.0, %v136
  %138 = vmatprep.mubr.bf16.mxu0 0
  %139 = vmatmul.mubr.bf16.gmra.mxu0 %v64
  %v140 = vpop.f32.mrf.mxu0
  %v141 = vadd.f32 0.0, %v140
  %v142 = vpop.f32.mrf.mxu0
  %v143 = vadd.f32 0.0, %v142
  %v144 = vpop.f32.mrf.mxu0
  %v145 = vadd.f32 0.0, %v144
  %v146 = vpop.f32.mrf.mxu0
  %v147 = vadd.f32 0.0, %v146
  %148 = vdwg.mxu0
  %149 = vmatprep.subr.bf16.mxu0 0
  %150 = vmatpush1.bf16.msra.mxu0 0
  %151 = vmatprep.subr.bf16.mxu0 0
  %152 = vmatpush1.bf16.msra.mxu0 0
  %153 = vmatprep.subr.bf16.mxu0 0
  %154 = vmatpush1.bf16.msra.mxu0 0
  %155 = vmatprep.subr.bf16.mxu0 0
  %156 = vmatpush1.bf16.msra.mxu0 0
  %157 = vmatprep.subr.bf16.mxu0 0
  %158 = vmatpush1.bf16.msra.mxu0 0
  %159 = vmatprep.subr.bf16.mxu0 0
  %160 = vmatpush1.bf16.msra.mxu0 0
  %161 = vmatprep.subr.bf16.mxu0 0
  %162 = vmatpush1.bf16.msra.mxu0 0
  %163 = vmatprep.subr.bf16.mxu0 0
  %164 = vmatpush1.bf16.msra.mxu0 %v74
  %165 = vmatprep.subr.bf16.mxu0 0
  %166 = vmatpush2.bf16.msra.mxu0 0
  %167 = vmatprep.subr.bf16.mxu0 0
  %168 = vmatpush2.bf16.msra.mxu0 0
  %169 = vmatprep.subr.bf16.mxu0 0
  %170 = vmatpush2.bf16.msra.mxu0 0
  %171 = vmatprep.subr.bf16.mxu0 0
  %172 = vmatpush2.bf16.msra.mxu0 0
  %173 = vmatprep.subr.bf16.mxu0 0
  %174 = vmatpush2.bf16.msra.mxu0 0
  %175 = vmatprep.subr.bf16.mxu0 0
  %176 = vmatpush2.bf16.msra.mxu0 0
  %177 = vmatprep.subr.bf16.mxu0 0
  %178 = vmatpush2.bf16.msra.mxu0 0
  %179 = vmatprep.subr.bf16.mxu0 0
  %180 = vmatpush2.bf16.msra.mxu0 0
  %181 = vmatprep.mubr.bf16.mxu0 0
  %182 = vmatmul.mubr.bf16.gmra.mxu0 %v55
  %v183 = vpop.f32.mrf.mxu0
  %v184 = vadd.f32 0.0, %v183
  %v185 = vpop.f32.mrf.mxu0
  %v186 = vpop.f32.mrf.mxu0
  %v187 = vadd.f32 0.0, %v186
  %v188 = vpop.f32.mrf.mxu0
  %189 = vmatprep.mubr.bf16.mxu0 0
  %190 = vmatmul.mubr.bf16.gmra.mxu0 %v58
  %v191 = vpop.f32.mrf.mxu0
  %v192 = vadd.f32 0.0, %v191
  %v193 = vpop.f32.mrf.mxu0
  %v194 = vpop.f32.mrf.mxu0
  %v195 = vadd.f32 0.0, %v194
  %v196 = vpop.f32.mrf.mxu0
  %197 = vmatprep.mubr.bf16.mxu0 0
  %198 = vmatmul.mubr.bf16.gmra.mxu0 %v61
  %v199 = vpop.f32.mrf.mxu0
  %v200 = vadd.f32 0.0, %v199
  %v201 = vpop.f32.mrf.mxu0
  %v202 = vpop.f32.mrf.mxu0
  %v203 = vadd.f32 0.0, %v202
  %v204 = vpop.f32.mrf.mxu0
  %205 = vmatprep.mubr.bf16.mxu0 0
  %206 = vmatmul.mubr.bf16.gmra.mxu0 %v64
  %v207 = vpop.f32.mrf.mxu0
  %v208 = vadd.f32 0.0, %v207
  %v209 = vpop.f32.mrf.mxu0
  %v210 = vpop.f32.mrf.mxu0
  %v211 = vadd.f32 0.0, %v210
  %v212 = vpop.f32.mrf.mxu0
  %213 = vdwg.mxu0
  %v214 = vld [vmem:[%s2] sm:$0x7]
  %215 = vrot.lane.b32.xlu0 %v111, 64
  %v216 = vpop.permute.xlu0 %215
  %217 = vrot.lane.b32.xlu0 %v115, 64
  %v218 = vpop.permute.xlu0 %217
  %219 = vrot.lane.b32.xlu0 %v121, 64
  %v220 = vpop.permute.xlu0 %219
  %221 = vrot.lane.b32.xlu0 %v125, 64
  %v222 = vpop.permute.xlu0 %221
  %223 = vrot.lane.b32.xlu0 %v131, 64
  %v224 = vpop.permute.xlu0 %223
  %225 = vrot.lane.b32.xlu0 %v135, 64
  %v226 = vpop.permute.xlu0 %225
  %227 = vrot.lane.b32.xlu0 %v141, 64
  %v228 = vpop.permute.xlu0 %227
  %229 = vrot.lane.b32.xlu0 %v145, 64
  %v230 = vpop.permute.xlu0 %229
  %v239 = vrot.slane %v216, 1
  %v240 = vrot.slane %v218, 1
  %v241 = vrot.slane %v220, 1
  %v242 = vrot.slane %v222, 1
  %v243 = vrot.slane %v224, 1
  %v244 = vrot.slane %v226, 1
  %v245 = vrot.slane %v228, 1
  %v246 = vrot.slane %v230, 1
  %v255 = vadd.f32 %v111, %v239
  %v256 = vadd.f32 %v115, %v240
  %v257 = vadd.f32 %v121, %v241
  %v258 = vadd.f32 %v125, %v242
  %v259 = vadd.f32 %v131, %v243
  %v260 = vadd.f32 %v135, %v244
  %v261 = vadd.f32 %v141, %v245
  %v262 = vadd.f32 %v145, %v246
  %v264 = vlaneseq
  %v265 = vshrl.u32 %v264, 7
  %v266 = vsub.s32 0, %v265
  %v267 = vrot.slane %v214, %v266
  %v269 = vadd.f32 %v255, %v267
  %v270 = vadd.f32 %v256, %v267
  %v271 = vadd.f32 %v257, %v267
  %v272 = vadd.f32 %v258, %v267
  %v273 = vadd.f32 %v259, %v267
  %v274 = vadd.f32 %v260, %v267
  %v275 = vadd.f32 %v261, %v267
  %v276 = vadd.f32 %v262, %v267
  %v277 = vmax.f32 %v269, 0.0
  %v278 = vmax.f32 %v270, 0.0
  %v279 = vmax.f32 %v271, 0.0
  %v280 = vmax.f32 %v272, 0.0
  %v281 = vmax.f32 %v273, 0.0
  %v282 = vmax.f32 %v274, 0.0
  %v283 = vmax.f32 %v275, 0.0
  %v284 = vmax.f32 %v276, 0.0
  %vm285 = vcmask 1046528
  %v286 = vsel %vm285, %v277, 0.0
  %v287 = vrot.slane %v286, 4
  %v288 = vadd.f32 %v286, %v287
  %v289 = vrot.slane %v288, 2
  %v290 = vadd.f32 %v288, %v289
  %v291 = vrot.slane %v290, 1
  %v292 = vadd.f32 %v290, %v291
  %v293 = vsel %vm285, %v278, 0.0
  %v294 = vrot.slane %v293, 4
  %v295 = vadd.f32 %v293, %v294
  %v296 = vrot.slane %v295, 2
  %v297 = vadd.f32 %v295, %v296
  %v298 = vrot.slane %v297, 1
  %v299 = vadd.f32 %v297, %v298
  %v300 = vsel %vm285, %v279, 0.0
  %v301 = vrot.slane %v300, 4
  %v302 = vadd.f32 %v300, %v301
  %v303 = vrot.slane %v302, 2
  %v304 = vadd.f32 %v302, %v303
  %v305 = vrot.slane %v304, 1
  %v306 = vadd.f32 %v304, %v305
  %v307 = vsel %vm285, %v280, 0.0
  %v308 = vrot.slane %v307, 4
  %v309 = vadd.f32 %v307, %v308
  %v310 = vrot.slane %v309, 2
  %v311 = vadd.f32 %v309, %v310
  %v312 = vrot.slane %v311, 1
  %v313 = vadd.f32 %v311, %v312
  %v314 = vsel %vm285, %v281, 0.0
  %v315 = vrot.slane %v314, 4
  %v316 = vadd.f32 %v314, %v315
  %v317 = vrot.slane %v316, 2
  %v318 = vadd.f32 %v316, %v317
  %v319 = vrot.slane %v318, 1
  %v320 = vadd.f32 %v318, %v319
  %v321 = vsel %vm285, %v282, 0.0
  %v322 = vrot.slane %v321, 4
  %v323 = vadd.f32 %v321, %v322
  %v324 = vrot.slane %v323, 2
  %v325 = vadd.f32 %v323, %v324
  %v326 = vrot.slane %v325, 1
  %v327 = vadd.f32 %v325, %v326
  %v328 = vsel %vm285, %v283, 0.0
  %v329 = vrot.slane %v328, 4
  %v330 = vadd.f32 %v328, %v329
  %v331 = vrot.slane %v330, 2
  %v332 = vadd.f32 %v330, %v331
  %v333 = vrot.slane %v332, 1
  %v334 = vadd.f32 %v332, %v333
  %v335 = vsel %vm285, %v284, 0.0
  %v336 = vrot.slane %v335, 4
  %v337 = vadd.f32 %v335, %v336
  %v338 = vrot.slane %v337, 2
  %v339 = vadd.f32 %v337, %v338
  %v340 = vrot.slane %v339, 1
  %v341 = vadd.f32 %v339, %v340
  %v342 = vmul.f32 %v292, 0.14285715
  %v343 = vmul.f32 %v299, 0.14285715
  %v344 = vmul.f32 %v306, 0.14285715
  %v345 = vmul.f32 %v313, 0.14285715
  %v346 = vmul.f32 %v320, 0.14285715
  %v347 = vmul.f32 %v327, 0.14285715
  %v348 = vmul.f32 %v334, 0.14285715
  %v349 = vmul.f32 %v341, 0.14285715
  %v350 = vadd.f32 %v342, 0.0
  %v351 = vadd.f32 %v343, 0.0
  %v352 = vadd.f32 %v344, 0.0
  %v353 = vadd.f32 %v345, 0.0
  %v354 = vadd.f32 %v346, 0.0
  %v355 = vadd.f32 %v347, 0.0
  %v356 = vadd.f32 %v348, 0.0
  %v357 = vadd.f32 %v349, 0.0
  %358 = vrot.lane.b32.xlu0 %v113, 64
  %v359 = vpop.permute.xlu0 %358
  %360 = vrot.lane.b32.xlu0 %v117, 64
  %v361 = vpop.permute.xlu0 %360
  %362 = vrot.lane.b32.xlu0 %v123, 64
  %v363 = vpop.permute.xlu0 %362
  %364 = vrot.lane.b32.xlu0 %v127, 64
  %v365 = vpop.permute.xlu0 %364
  %366 = vrot.lane.b32.xlu0 %v133, 64
  %v367 = vpop.permute.xlu0 %366
  %368 = vrot.lane.b32.xlu0 %v137, 64
  %v369 = vpop.permute.xlu0 %368
  %370 = vrot.lane.b32.xlu0 %v143, 64
  %v371 = vpop.permute.xlu0 %370
  %372 = vrot.lane.b32.xlu0 %v147, 64
  %v373 = vpop.permute.xlu0 %372
  %v382 = vrot.slane %v359, 2
  %v383 = vrot.slane %v361, 2
  %v384 = vrot.slane %v363, 2
  %v385 = vrot.slane %v365, 2
  %v386 = vrot.slane %v367, 2
  %v387 = vrot.slane %v369, 2
  %v388 = vrot.slane %v371, 2
  %v389 = vrot.slane %v373, 2
  %v398 = vadd.f32 %v113, %v382
  %v399 = vadd.f32 %v117, %v383
  %v400 = vadd.f32 %v123, %v384
  %v401 = vadd.f32 %v127, %v385
  %v402 = vadd.f32 %v133, %v386
  %v403 = vadd.f32 %v137, %v387
  %v404 = vadd.f32 %v143, %v388
  %v405 = vadd.f32 %v147, %v389
  %v406 = vrot.slane %v214, 1
  %v407 = vlaneseq
  %v408 = vshrl.u32 %v407, 7
  %v409 = vsub.s32 0, %v408
  %v410 = vrot.slane %v406, %v409
  %v412 = vadd.f32 %v398, %v410
  %v413 = vadd.f32 %v399, %v410
  %v414 = vadd.f32 %v400, %v410
  %v415 = vadd.f32 %v401, %v410
  %v416 = vadd.f32 %v402, %v410
  %v417 = vadd.f32 %v403, %v410
  %v418 = vadd.f32 %v404, %v410
  %v419 = vadd.f32 %v405, %v410
  %v420 = vmax.f32 %v412, 0.0
  %v421 = vmax.f32 %v413, 0.0
  %v422 = vmax.f32 %v414, 0.0
  %v423 = vmax.f32 %v415, 0.0
  %v424 = vmax.f32 %v416, 0.0
  %v425 = vmax.f32 %v417, 0.0
  %v426 = vmax.f32 %v418, 0.0
  %v427 = vmax.f32 %v419, 0.0
  %vm428 = vcmask 1045504
  %v429 = vsel %vm428, %v420, 0.0
  %v430 = vrot.slane %v429, 4
  %v431 = vadd.f32 %v429, %v430
  %v432 = vrot.slane %v431, 2
  %v433 = vadd.f32 %v431, %v432
  %v434 = vrot.slane %v433, 1
  %v435 = vadd.f32 %v433, %v434
  %v436 = vsel %vm428, %v421, 0.0
  %v437 = vrot.slane %v436, 4
  %v438 = vadd.f32 %v436, %v437
  %v439 = vrot.slane %v438, 2
  %v440 = vadd.f32 %v438, %v439
  %v441 = vrot.slane %v440, 1
  %v442 = vadd.f32 %v440, %v441
  %v443 = vsel %vm428, %v422, 0.0
  %v444 = vrot.slane %v443, 4
  %v445 = vadd.f32 %v443, %v444
  %v446 = vrot.slane %v445, 2
  %v447 = vadd.f32 %v445, %v446
  %v448 = vrot.slane %v447, 1
  %v449 = vadd.f32 %v447, %v448
  %v450 = vsel %vm428, %v423, 0.0
  %v451 = vrot.slane %v450, 4
  %v452 = vadd.f32 %v450, %v451
  %v453 = vrot.slane %v452, 2
  %v454 = vadd.f32 %v452, %v453
  %v455 = vrot.slane %v454, 1
  %v456 = vadd.f32 %v454, %v455
  %v457 = vsel %vm428, %v424, 0.0
  %v458 = vrot.slane %v457, 4
  %v459 = vadd.f32 %v457, %v458
  %v460 = vrot.slane %v459, 2
  %v461 = vadd.f32 %v459, %v460
  %v462 = vrot.slane %v461, 1
  %v463 = vadd.f32 %v461, %v462
  %v464 = vsel %vm428, %v425, 0.0
  %v465 = vrot.slane %v464, 4
  %v466 = vadd.f32 %v464, %v465
  %v467 = vrot.slane %v466, 2
  %v468 = vadd.f32 %v466, %v467
  %v469 = vrot.slane %v468, 1
  %v470 = vadd.f32 %v468, %v469
  %v471 = vsel %vm428, %v426, 0.0
  %v472 = vrot.slane %v471, 4
  %v473 = vadd.f32 %v471, %v472
  %v474 = vrot.slane %v473, 2
  %v475 = vadd.f32 %v473, %v474
  %v476 = vrot.slane %v475, 1
  %v477 = vadd.f32 %v475, %v476
  %v478 = vsel %vm428, %v427, 0.0
  %v479 = vrot.slane %v478, 4
  %v480 = vadd.f32 %v478, %v479
  %v481 = vrot.slane %v480, 2
  %v482 = vadd.f32 %v480, %v481
  %v483 = vrot.slane %v482, 1
  %v484 = vadd.f32 %v482, %v483
  %v485 = vmul.f32 %v435, 0.16666667
  %v486 = vmul.f32 %v442, 0.16666667
  %v487 = vmul.f32 %v449, 0.16666667
  %v488 = vmul.f32 %v456, 0.16666667
  %v489 = vmul.f32 %v463, 0.16666667
  %v490 = vmul.f32 %v470, 0.16666667
  %v491 = vmul.f32 %v477, 0.16666667
  %v492 = vmul.f32 %v484, 0.16666667
  %v493 = vadd.f32 %v350, %v485
  %v494 = vadd.f32 %v351, %v486
  %v495 = vadd.f32 %v352, %v487
  %v496 = vadd.f32 %v353, %v488
  %v497 = vadd.f32 %v354, %v489
  %v498 = vadd.f32 %v355, %v490
  %v499 = vadd.f32 %v356, %v491
  %v500 = vadd.f32 %v357, %v492
  %501 = vrot.lane.b32.xlu0 %v184, 64
  %v502 = vpop.permute.xlu0 %501
  %503 = vrot.lane.b32.xlu0 %v187, 64
  %v504 = vpop.permute.xlu0 %503
  %505 = vrot.lane.b32.xlu0 %v192, 64
  %v506 = vpop.permute.xlu0 %505
  %507 = vrot.lane.b32.xlu0 %v195, 64
  %v508 = vpop.permute.xlu0 %507
  %509 = vrot.lane.b32.xlu0 %v200, 64
  %v510 = vpop.permute.xlu0 %509
  %511 = vrot.lane.b32.xlu0 %v203, 64
  %v512 = vpop.permute.xlu0 %511
  %513 = vrot.lane.b32.xlu0 %v208, 64
  %v514 = vpop.permute.xlu0 %513
  %515 = vrot.lane.b32.xlu0 %v211, 64
  %v516 = vpop.permute.xlu0 %515
  %v525 = vrot.slane %v502, 4
  %v526 = vrot.slane %v504, 4
  %v527 = vrot.slane %v506, 4
  %v528 = vrot.slane %v508, 4
  %v529 = vrot.slane %v510, 4
  %v530 = vrot.slane %v512, 4
  %v531 = vrot.slane %v514, 4
  %v532 = vrot.slane %v516, 4
  %v541 = vadd.f32 %v184, %v525
  %v542 = vadd.f32 %v187, %v526
  %v543 = vadd.f32 %v192, %v527
  %v544 = vadd.f32 %v195, %v528
  %v545 = vadd.f32 %v200, %v529
  %v546 = vadd.f32 %v203, %v530
  %v547 = vadd.f32 %v208, %v531
  %v548 = vadd.f32 %v211, %v532
  %v549 = vrot.slane %v214, 2
  %v550 = vlaneseq
  %v551 = vshrl.u32 %v550, 7
  %v552 = vsub.s32 0, %v551
  %v553 = vrot.slane %v549, %v552
  %v555 = vadd.f32 %v541, %v553
  %v556 = vadd.f32 %v542, %v553
  %v557 = vadd.f32 %v543, %v553
  %v558 = vadd.f32 %v544, %v553
  %v559 = vadd.f32 %v545, %v553
  %v560 = vadd.f32 %v546, %v553
  %v561 = vadd.f32 %v547, %v553
  %v562 = vadd.f32 %v548, %v553
  %v563 = vmax.f32 %v555, 0.0
  %v564 = vmax.f32 %v556, 0.0
  %v565 = vmax.f32 %v557, 0.0
  %v566 = vmax.f32 %v558, 0.0
  %v567 = vmax.f32 %v559, 0.0
  %v568 = vmax.f32 %v560, 0.0
  %v569 = vmax.f32 %v561, 0.0
  %v570 = vmax.f32 %v562, 0.0
  %vm571 = vcmask 1043456
  %v572 = vsel %vm571, %v563, 0.0
  %v573 = vrot.slane %v572, 4
  %v574 = vadd.f32 %v572, %v573
  %v575 = vrot.slane %v574, 2
  %v576 = vadd.f32 %v574, %v575
  %v577 = vrot.slane %v576, 1
  %v578 = vadd.f32 %v576, %v577
  %v579 = vsel %vm571, %v564, 0.0
  %v580 = vrot.slane %v579, 4
  %v581 = vadd.f32 %v579, %v580
  %v582 = vrot.slane %v581, 2
  %v583 = vadd.f32 %v581, %v582
  %v584 = vrot.slane %v583, 1
  %v585 = vadd.f32 %v583, %v584
  %v586 = vsel %vm571, %v565, 0.0
  %v587 = vrot.slane %v586, 4
  %v588 = vadd.f32 %v586, %v587
  %v589 = vrot.slane %v588, 2
  %v590 = vadd.f32 %v588, %v589
  %v591 = vrot.slane %v590, 1
  %v592 = vadd.f32 %v590, %v591
  %v593 = vsel %vm571, %v566, 0.0
  %v594 = vrot.slane %v593, 4
  %v595 = vadd.f32 %v593, %v594
  %v596 = vrot.slane %v595, 2
  %v597 = vadd.f32 %v595, %v596
  %v598 = vrot.slane %v597, 1
  %v599 = vadd.f32 %v597, %v598
  %v600 = vsel %vm571, %v567, 0.0
  %v601 = vrot.slane %v600, 4
  %v602 = vadd.f32 %v600, %v601
  %v603 = vrot.slane %v602, 2
  %v604 = vadd.f32 %v602, %v603
  %v605 = vrot.slane %v604, 1
  %v606 = vadd.f32 %v604, %v605
  %v607 = vsel %vm571, %v568, 0.0
  %v608 = vrot.slane %v607, 4
  %v609 = vadd.f32 %v607, %v608
  %v610 = vrot.slane %v609, 2
  %v611 = vadd.f32 %v609, %v610
  %v612 = vrot.slane %v611, 1
  %v613 = vadd.f32 %v611, %v612
  %v614 = vsel %vm571, %v569, 0.0
  %v615 = vrot.slane %v614, 4
  %v616 = vadd.f32 %v614, %v615
  %v617 = vrot.slane %v616, 2
  %v618 = vadd.f32 %v616, %v617
  %v619 = vrot.slane %v618, 1
  %v620 = vadd.f32 %v618, %v619
  %v621 = vsel %vm571, %v570, 0.0
  %v622 = vrot.slane %v621, 4
  %v623 = vadd.f32 %v621, %v622
  %v624 = vrot.slane %v623, 2
  %v625 = vadd.f32 %v623, %v624
  %v626 = vrot.slane %v625, 1
  %v627 = vadd.f32 %v625, %v626
  %v628 = vmul.f32 %v578, 0.25
  %v629 = vmul.f32 %v585, 0.25
  %v630 = vmul.f32 %v592, 0.25
  %v631 = vmul.f32 %v599, 0.25
  %v632 = vmul.f32 %v606, 0.25
  %v633 = vmul.f32 %v613, 0.25
  %v634 = vmul.f32 %v620, 0.25
  %v635 = vmul.f32 %v627, 0.25
  %v636 = vadd.f32 %v493, %v628
  %v637 = vadd.f32 %v494, %v629
  %v638 = vadd.f32 %v495, %v630
  %v639 = vadd.f32 %v496, %v631
  %v640 = vadd.f32 %v497, %v632
  %v641 = vadd.f32 %v498, %v633
  %v642 = vadd.f32 %v499, %v634
  %v643 = vadd.f32 %v500, %v635
  %vm652 = vcmask 1041409
  %v653 = vsel %vm652, %v637, %v636
  %vm654 = vcmask 1042434
  %v655 = vsel %vm654, %v638, %v653
  %vm656 = vcmask 1043459
  %v657 = vsel %vm656, %v639, %v655
  %vm658 = vcmask 1044484
  %v659 = vsel %vm658, %v640, %v657
  %vm660 = vcmask 1045509
  %v661 = vsel %vm660, %v641, %v659
  %vm662 = vcmask 1046534
  %v663 = vsel %vm662, %v642, %v661
  %vm664 = vcmask 1047559
  %v665 = vsel %vm664, %v643, %v663
  %667 = vst [vmem:[%s3] sm:$0xff] %v665
  // Predicated region
  $region14: #{discarded_module.1} parent=0 // pred_check
    _
  $region15: #{discarded_module.1} parent=0 // pred_check_branch
    %669 = sbr.rel (0) target = $region17
  $region16: #{discarded_module.1} parent=0 // pred_region
    _
  $region17: #{discarded_module.1} parent=0 // pred_fallthru
    _
  // Predicated region
  $region18: #{discarded_module.1} parent=0 // pred_check
    _
  $region19: #{discarded_module.1} parent=0 // pred_check_branch
    %671 = sbr.rel (0) target = $region21
  $region20: #{discarded_module.1} parent=0 // pred_region
    _
  $region21: #{discarded_module.1} parent=0 // pred_fallthru
    _

</llo_original>
